<compile_context>
chip_gen: v5e
topology: v5e:2x2
jax: 0.10.0
libtpu: 0.0.40
codegen_flags: <defaults>
</compile_context>

<pallas_src>
import functools

import jax
import jax.numpy as jnp
from jax.experimental import pallas as pl
from jax.experimental.pallas import tpu as pltpu


def _round_up(x, m):
    return (x + m - 1) // m * m


_DEFAULT_VMEM_CAP = 64 * 1024 * 1024  # conservative (v7x per-TC)


def _vmem_capacity_bytes():
    try:
        info = pltpu.get_tpu_info()
        cap = int(getattr(info, "vmem_capacity_bytes", _DEFAULT_VMEM_CAP))
        return cap if cap > 0 else _DEFAULT_VMEM_CAP
    except Exception:  # interpret mode / unknown chip
        return _DEFAULT_VMEM_CAP


def _pick_batch_tile(b, max_tile):
    """Largest multiple-of-16 tile <= max_tile that minimizes batch padding."""
    b16 = _round_up(b, 16)
    if b16 <= max_tile:
        return b16
    best_tb, best_pad = 16, _round_up(b, 16)
    for tb in range(16, max_tile + 1, 16):
        b_pad = _round_up(b, tb)
        if b_pad <= best_pad:           # prefer larger tile on ties
            best_tb, best_pad = tb, b_pad
    return best_tb


# ----------------------------------------------------------------------------
# Pallas kernel (shared by dueling / non-dueling; statics baked via partial)
# ----------------------------------------------------------------------------
def _qhead_kernel(x_ref, w1_ref, b1_ref, w2_ref, b2_ref, out_ref, *,
                  n_actions, dueling):
    x = x_ref[...].astype(jnp.bfloat16)                              # (TB, Dp)

    # Fused layer 1: [value | advantage] hidden in one bf16 MXU pass, f32 acc.
    h = jnp.dot(x, w1_ref[...], preferred_element_type=jnp.float32) + b1_ref[...]
    h = jnp.maximum(h, 0.0)                                          # (TB, W1C)

    # Fused block-diagonal head.  Dueling: lanes 0..A-1 = advantage, lane A =
    # value.  Plain: lanes 0..A-1 = Q values.  Padded lanes are exactly zero.
    out = jnp.dot(h.astype(jnp.bfloat16), w2_ref[...],
                  preferred_element_type=jnp.float32) + b2_ref[...]

    if dueling:
        value = out[:, n_actions:n_actions + 1]                      # (TB, 1)
        total = jnp.sum(out, axis=-1, keepdims=True)                 # XLU reduce
        adv_mean = (total - value) * (1.0 / n_actions)               # true-A mean
        out = out - adv_mean + value                                 # (TB, OUTP)

    out_ref[...] = out                                               # lane-dense store


# ----------------------------------------------------------------------------
# Parameter init (deterministic, mimics nn.Linear default uniform init)
# ----------------------------------------------------------------------------
def _init_linear(key, in_f, out_f):
    bound = 1.0 / float(in_f) ** 0.5
    kw, kb = jax.random.split(key)
    # stored transposed: (in_f, out_f) so the kernel does y = x @ W + b
    w = jax.random.uniform(kw, (in_f, out_f), jnp.float32, -bound, bound)
    b = jax.random.uniform(kb, (out_f,), jnp.float32, -bound, bound)
    return w, b


class FlattenFeatureNet:
    """Simple feature net: flatten NCHW input. out_dim = C*H*W."""

    def __init__(self, c, h, w):
        self.out_dim = c * h * w

    def forward(self, x):
        return x.reshape(x.shape[0], -1)


class QNetworkPallas:
    def __init__(self, feature_net, n_actions, n_hidden=1024, dueling=False,
                 key=jax.random.PRNGKey(0), batch_tile=None):
        self.feature_net = feature_net
        self.dueling = dueling
        self.n_actions = n_actions
        self.n_hidden = n_hidden

        self.vmem_cap = _vmem_capacity_bytes()
        if batch_tile is None:
            # Bigger tiles on 128 MiB parts (v5e/v6e), smaller on v7x (64 MiB/TC).
            batch_tile = 512 if self.vmem_cap >= 100 * 1024 * 1024 else 256
        self.batch_tile = max(16, _round_up(batch_tile, 16))

        d = feature_net.out_dim
        self.d = d
        self.d_pad = _round_up(d, 128)
        self.h_pad = _round_up(n_hidden, 128)

        k1, k2, k3, k4 = jax.random.split(key, 4)
        # Raw (unfused) f32 parameters — kept for the reference check.
        self.wv, self.bv = _init_linear(k1, d, n_hidden)
        self.wvh, self.bvh = _init_linear(k2, n_hidden,
                                          1 if dueling else n_actions)
        if dueling:
            self.wa, self.ba = _init_linear(k3, d, n_hidden)
            self.wah, self.bah = _init_linear(k4, n_hidden, n_actions)
            self.w1_cols = 2 * self.h_pad
            self.out_pad = _round_up(n_actions + 1, 128)
        else:
            self.w1_cols = self.h_pad
            self.out_pad = _round_up(n_actions, 128)

        # Fused, zero-padded, lane-aligned weights for the kernel.
        w1 = jnp.zeros((self.d_pad, self.w1_cols), jnp.float32)
        b1 = jnp.zeros((1, self.w1_cols), jnp.float32)
        w2 = jnp.zeros((self.w1_cols, self.out_pad), jnp.float32)
        b2 = jnp.zeros((1, self.out_pad), jnp.float32)

        w1 = w1.at[:d, :n_hidden].set(self.wv)
        b1 = b1.at[0, :n_hidden].set(self.bv)
        if dueling:
            w1 = w1.at[:d, self.h_pad:self.h_pad + n_hidden].set(self.wa)
            b1 = b1.at[0, self.h_pad:self.h_pad + n_hidden].set(self.ba)
            # Block-diagonal head: advantage hidden -> lanes 0..A-1 (so the
            # wrapper slice is lane-aligned), value hidden -> lane A.
            w2 = w2.at[self.h_pad:self.h_pad + n_hidden,
                       0:n_actions].set(self.wah)
            b2 = b2.at[0, 0:n_actions].set(self.bah)
            w2 = w2.at[:n_hidden, n_actions:n_actions + 1].set(self.wvh)
            b2 = b2.at[0, n_actions].set(self.bvh[0])
        else:
            w2 = w2.at[:n_hidden, :n_actions].set(self.wvh)
            b2 = b2.at[0, :n_actions].set(self.bvh)

        # bf16 MXU inputs (f32 accumulation in the kernel); biases stay f32.
        self.w1 = w1.astype(jnp.bfloat16)
        self.w2 = w2.astype(jnp.bfloat16)
        self.b1 = b1
        self.b2 = b2

    def __call__(self, x):
        feats = self.feature_net.forward(x).astype(jnp.float32)     # (B, D)
        b = feats.shape[0]

        tb = _pick_batch_tile(b, self.batch_tile)                    # mult of 16
        b_pad = _round_up(b, tb)
        # v7x megacore: ensure >= 2 grid steps so both TensorCores get work.
        if b_pad // tb < 2 and tb >= 32:
            tb = _round_up(tb // 2, 16)
            b_pad = _round_up(b, tb)

        # Only materialize a padded copy when actually required.
        if b_pad != b or self.d_pad != self.d:
            feats_p = jnp.pad(feats, ((0, b_pad - b), (0, self.d_pad - self.d)))
        else:
            feats_p = feats

        grid = (b_pad // tb,)
        kernel = functools.partial(_qhead_kernel,
                                   n_actions=self.n_actions,
                                   dueling=self.dueling)

        flops = (2 * b_pad * self.d_pad * self.w1_cols
                 + 2 * b_pad * self.w1_cols * self.out_pad)
        bytes_accessed = (4 * b_pad * self.d_pad                     # x (f32)
                          + 2 * (self.w1.size + self.w2.size)        # bf16 weights
                          + 4 * (self.b1.size + self.b2.size)        # f32 biases
                          + 4 * b_pad * self.out_pad)                # f32 out

        # Generation-aware VMEM limit (leave headroom for Mosaic scratch).
        vmem_limit = max(32 * 1024 * 1024,
                         min(self.vmem_cap * 3 // 4, 112 * 1024 * 1024))

        y = pl.pallas_call(
            kernel,
            out_shape=jax.ShapeDtypeStruct((b_pad, self.out_pad), jnp.float32),
            grid=grid,
            in_specs=[
                # x tile streams (double-buffered) across the batch grid
                pl.BlockSpec((tb, self.d_pad), lambda i: (i, 0)),
                # weights/biases stay resident in VMEM: constant index_map and
                # single-buffered (no wasted second VMEM buffer on v7x).
                pl.BlockSpec((self.d_pad, self.w1_cols), lambda i: (0, 0),
                             pipeline_mode=pl.Buffered(1)),
                pl.BlockSpec((1, self.w1_cols), lambda i: (0, 0),
                             pipeline_mode=pl.Buffered(1)),
                pl.BlockSpec((self.w1_cols, self.out_pad), lambda i: (0, 0),
                             pipeline_mode=pl.Buffered(1)),
                pl.BlockSpec((1, self.out_pad), lambda i: (0, 0),
                             pipeline_mode=pl.Buffered(1)),
            ],
            out_specs=pl.BlockSpec((tb, self.out_pad), lambda i: (i, 0)),
            compiler_params=pltpu.CompilerParams(
                dimension_semantics=("parallel",),
                vmem_limit_bytes=vmem_limit),
            cost_estimate=pl.CostEstimate(
                flops=flops, transcendentals=0, bytes_accessed=bytes_accessed),
        )(feats_p, self.w1, self.b1, self.w2, self.b2)

        # Lane-aligned slice (starts at lane 0 for both dueling and plain).
        return y[:b, :self.n_actions]


# ----------------------------------------------------------------------------
# Reference (pure jnp, unfused f32 weights) for the correctness check
# ----------------------------------------------------------------------------
def _reference(net: QNetworkPallas, x):
    feats = net.feature_net.forward(x)
    h_v = jnp.maximum(feats @ net.wv + net.bv, 0.0)
    value = h_v @ net.wvh + net.bvh
    if net.dueling:
        h_a = jnp.maximum(feats @ net.wa + net.ba, 0.0)
        adv = h_a @ net.wah + net.bah
        return adv - adv.mean(axis=-1, keepdims=True) + value
    return value


if __name__ == "__main__":
    B, C, H, W = 2, 4, 16, 16
    N_ACTIONS, N_HIDDEN = 8, 32

    key = jax.random.PRNGKey(0)
    k_x, k_params = jax.random.split(key)
    x = jax.random.normal(k_x, (B, C, H, W), jnp.float32)   # NCHW like PyTorch

    feat = FlattenFeatureNet(C, H, W)

    # Dueling head (matmuls, ReLU, mean-reduction, broadcast combine).
    qnet_duel = QNetworkPallas(feat, N_ACTIONS, n_hidden=N_HIDDEN,
                               dueling=True, key=k_params)
    out_duel = jax.block_until_ready(qnet_duel(x))
    ref_duel = _reference(qnet_duel, x)
    assert out_duel.shape == (B, N_ACTIONS)
    # bf16 MXU inputs with f32 accumulation -> slightly looser tolerance.
    assert jnp.allclose(out_duel, ref_duel, atol=2e-2, rtol=2e-2)

    # Non-dueling head.
    qnet_plain = QNetworkPallas(feat, N_ACTIONS, n_hidden=N_HIDDEN,
                                dueling=False, key=k_params)
    out_plain = jax.block_until_ready(qnet_plain(x))
    ref_plain = _reference(qnet_plain, x)
    assert out_plain.shape == (B, N_ACTIONS)
    assert jnp.allclose(out_plain, ref_plain, atol=2e-2, rtol=2e-2)

    print("KERNEL_OK")
</pallas_src>

<mosaic_0001>
module attributes {stable_mosaic.version = 11 : i64} {
  func.func @_qhead_kernel(%arg0: i32, %arg1: memref<16x1024xf32, #tpu.memory_space<vmem>>, %arg2: memref<1024x256xbf16, #tpu.memory_space<vmem>>, %arg3: memref<1x256xf32, #tpu.memory_space<vmem>>, %arg4: memref<256x128xbf16, #tpu.memory_space<vmem>>, %arg5: memref<1x128xf32, #tpu.memory_space<vmem>>, %arg6: memref<16x128xf32, #tpu.memory_space<vmem>>) attributes {dimension_semantics = [#tpu.dimension_semantics<parallel>], iteration_bounds = array<i64: 1>, scalar_prefetch = 0 : i64, scratch_operands = 0 : i64, tpu.core_type = #tpu.core_type<tc>, window_params = [{transform_indices = @transform_0, window_bounds = array<i64: 16, 1024>}, {pipeline_mode = #tpu.pipeline_mode<synchronous>, transform_indices = @transform_1, window_bounds = array<i64: 1024, 256>}, {pipeline_mode = #tpu.pipeline_mode<synchronous>, transform_indices = @transform_2, window_bounds = array<i64: 1, 256>}, {pipeline_mode = #tpu.pipeline_mode<synchronous>, transform_indices = @transform_3, window_bounds = array<i64: 256, 128>}, {pipeline_mode = #tpu.pipeline_mode<synchronous>, transform_indices = @transform_4, window_bounds = array<i64: 1, 128>}, {transform_indices = @transform_5, window_bounds = array<i64: 16, 128>}]} {
    %c0 = arith.constant 0 : index
    %c0_0 = arith.constant 0 : index
    %0 = vector.load %arg1[%c0, %c0_0] : memref<16x1024xf32, #tpu.memory_space<vmem>>, vector<16x1024xf32>
    %1 = arith.truncf %0 : vector<16x1024xf32> to vector<16x1024xbf16>
    %c0_1 = arith.constant 0 : index
    %c0_2 = arith.constant 0 : index
    %2 = vector.load %arg2[%c0_1, %c0_2] : memref<1024x256xbf16, #tpu.memory_space<vmem>>, vector<1024x256xbf16>
    %cst = arith.constant dense<0.000000e+00> : vector<16x256xf32>
    %3 = tpu.matmul %1, %2, %cst {dimension_numbers = #tpu.dot_dimension_numbers<[1], [0], [0], [1], [0, 0, 1, 1], [], []>} : vector<16x1024xbf16>, vector<1024x256xbf16>, vector<16x256xf32> -> vector<16x256xf32>
    %c0_3 = arith.constant 0 : index
    %c0_4 = arith.constant 0 : index
    %4 = vector.load %arg3[%c0_3, %c0_4] : memref<1x256xf32, #tpu.memory_space<vmem>>, vector<1x256xf32>
    %5 = vector.broadcast %4 : vector<1x256xf32> to vector<16x256xf32>
    %6 = arith.addf %3, %5 : vector<16x256xf32>
    %cst_5 = arith.constant 0.000000e+00 : f32
    %7 = vector.broadcast %cst_5 : f32 to vector<16x256xf32>
    %8 = arith.maximumf %6, %7 : vector<16x256xf32>
    %9 = arith.truncf %8 : vector<16x256xf32> to vector<16x256xbf16>
    %c0_6 = arith.constant 0 : index
    %c0_7 = arith.constant 0 : index
    %10 = vector.load %arg4[%c0_6, %c0_7] : memref<256x128xbf16, #tpu.memory_space<vmem>>, vector<256x128xbf16>
    %cst_8 = arith.constant dense<0.000000e+00> : vector<16x128xf32>
    %11 = tpu.matmul %9, %10, %cst_8 {dimension_numbers = #tpu.dot_dimension_numbers<[1], [0], [0], [1], [0, 0, 1, 1], [], []>} : vector<16x256xbf16>, vector<256x128xbf16>, vector<16x128xf32> -> vector<16x128xf32>
    %c0_9 = arith.constant 0 : index
    %c0_10 = arith.constant 0 : index
    %12 = vector.load %arg5[%c0_9, %c0_10] : memref<1x128xf32, #tpu.memory_space<vmem>>, vector<1x128xf32>
    %13 = vector.broadcast %12 : vector<1x128xf32> to vector<16x128xf32>
    %14 = arith.addf %11, %13 : vector<16x128xf32>
    %15 = vector.extract_strided_slice %14 {offsets = [0, 8], sizes = [16, 1], strides = [1, 1]} : vector<16x128xf32> to vector<16x1xf32>
    %cst_11 = arith.constant dense<0.000000e+00> : vector<16xf32>
    %16 = vector.multi_reduction <add>, %14, %cst_11 [1] : vector<16x128xf32> to vector<16xf32>
    %17 = vector.shape_cast %16 : vector<16xf32> to vector<16x1xf32>
    %18 = arith.subf %17, %15 : vector<16x1xf32>
    %cst_12 = arith.constant 1.250000e-01 : f32
    %19 = vector.broadcast %cst_12 : f32 to vector<16x1xf32>
    %20 = arith.mulf %18, %19 : vector<16x1xf32>
    %21 = vector.broadcast %20 : vector<16x1xf32> to vector<16x128xf32>
    %22 = arith.subf %14, %21 : vector<16x128xf32>
    %23 = vector.broadcast %15 : vector<16x1xf32> to vector<16x128xf32>
    %24 = arith.addf %22, %23 : vector<16x128xf32>
    %c0_13 = arith.constant 0 : index
    %c0_14 = arith.constant 0 : index
    %25 = vector.load %arg6[%c0_13, %c0_14] : memref<16x128xf32, #tpu.memory_space<vmem>>, vector<16x128xf32>
    tpu.vector_store %arg6[%c0_13, %c0_14], %24 {strides = array<i32>} : memref<16x128xf32, #tpu.memory_space<vmem>>, vector<16x128xf32>,
    return
  }
  func.func @transform_0(%arg0: i32) -> (i32, i32) {
    %c0_i32 = arith.constant 0 : i32
    %c0_i32_0 = arith.constant 0 : i32
    return %arg0, %c0_i32 : i32, i32
  }
  func.func @transform_1(%arg0: i32) -> (i32, i32) {
    %c0_i32 = arith.constant 0 : i32
    %c0_i32_0 = arith.constant 0 : i32
    %c0_i32_1 = arith.constant 0 : i32
    return %c0_i32, %c0_i32_0 : i32, i32
  }
  func.func @transform_2(%arg0: i32) -> (i32, i32) {
    %c0_i32 = arith.constant 0 : i32
    %c0_i32_0 = arith.constant 0 : i32
    %c0_i32_1 = arith.constant 0 : i32
    return %c0_i32, %c0_i32_0 : i32, i32
  }
  func.func @transform_3(%arg0: i32) -> (i32, i32) {
    %c0_i32 = arith.constant 0 : i32
    %c0_i32_0 = arith.constant 0 : i32
    %c0_i32_1 = arith.constant 0 : i32
    return %c0_i32, %c0_i32_0 : i32, i32
  }
  func.func @transform_4(%arg0: i32) -> (i32, i32) {
    %c0_i32 = arith.constant 0 : i32
    %c0_i32_0 = arith.constant 0 : i32
    %c0_i32_1 = arith.constant 0 : i32
    return %c0_i32, %c0_i32_0 : i32, i32
  }
  func.func @transform_5(%arg0: i32) -> (i32, i32) {
    %c0_i32 = arith.constant 0 : i32
    %c0_i32_0 = arith.constant 0 : i32
    return %arg0, %c0_i32 : i32, i32
  }
}

</mosaic_0001>

<llo_original>
// kernel: tpu_custom_call.1
$region0: #{tpu_custom_call.1}
  #allocation0 [shape = 'u32[]', space=smem, size = 0x4, offset = 0x4, fixed_abs, tag = 'smem constant byte address 0x4 - core index']
  #allocation1 [shape = 'u32[72,128]{1,0:T(1,128)}', space=vmem, size = 0x9000, scoped, tag = 'internal scratch']
  %s0 = inlined_call_operand.hbm [shape: f32[16,1024], index: 0, kind: input, shape index: {}]
  %s1 = inlined_call_operand.hbm [shape: bf16[1024,256], index: 1, kind: input, shape index: {}]
  %s2 = inlined_call_operand.hbm [shape: f32[1,256], index: 2, kind: input, shape index: {}]
  %s3 = inlined_call_operand.hbm [shape: bf16[256,128], index: 3, kind: input, shape index: {}]
  %s4 = inlined_call_operand.vmem [shape: f32[1,128], index: 4, kind: input, shape index: {}]
  %s5 = inlined_call_operand.hbm [shape: f32[16,128], index: 5, kind: output, shape index: {}]
  %s6 = sld [smem:[#allocation0]]
  $region46: #{tpu_custom_call.1} parent=0
    _
  %s8 = ssub.s32 1, %s6
  %s9 = scalar_select 0, %s8, %s6
  $region1: #{tpu_custom_call.1} parent=0
    #allocation2 [shape = 'u8[65536]{0}', space=vmem, size = 0x10000, scoped, tag = 'input window, operand 0, single buffered']
    #allocation3 [shape = 's32[1]{0}', space=sflag, size = 0x4, scoped, tag = 'scoped memory for tpu_custom_call.1']
    #allocation4 [shape = 's32[1]{0}', space=sflag, size = 0x4, scoped, tag = 'scoped memory for tpu_custom_call.1']
    #allocation5 [shape = 'u8[524288]{0}', space=vmem, size = 0x80000, scoped, tag = 'input window, operand 1, single buffered']
    #allocation6 [shape = 's32[1]{0}', space=sflag, size = 0x4, scoped, tag = 'scoped memory for tpu_custom_call.1']
    #allocation7 [shape = 'u8[1024]{0}', space=vmem, size = 0x400, scoped, tag = 'input window, operand 2, single buffered']
    #allocation8 [shape = 'u8[65536]{0}', space=vmem, size = 0x10000, scoped, tag = 'input window, operand 3, single buffered']
    #allocation9 [shape = 's32[1]{0}', space=sflag, size = 0x4, scoped, tag = 'scoped memory for tpu_custom_call.1']
    #allocation10 [shape = 'u8[8192]{0}', space=vmem, size = 0x2000, scoped, tag = 'output window, operand 0, single buffered']
    %10 = vsyncpa [#allocation3], 0
    %11 = vsyncpa [#allocation6], 0
    %12 = vsyncpa [#allocation9], 0
    %13 = vsyncpa [#allocation4], 0
    // Predicated region
    $region2: #{tpu_custom_call.1} parent=1 // pred_check
      _
    $region3: #{tpu_custom_call.1} parent=1 // pred_check_branch
      %15 = sbr.rel (0) target = $region5
    $region4: #{tpu_custom_call.1} parent=1 // pred_region
      %17 = vsyncadd [#allocation3], 0
      %s18 = sshll.u32 %s0, 4
      %s19 = int_to_ptr.hbm [resolvable:$true] %s18
      %s20 = sshll.u32 [#allocation2], 4
      %s21 = int_to_ptr.vmem [resolvable:$true] %s20
      %26 = dma.hbm_to_vmem [thread:$0]  %s19, 2048, %s21, [#allocation3], 1024, 1024, 64
    $region5: #{tpu_custom_call.1} parent=1 // pred_fallthru
      _
    // Predicated region
    $region6: #{tpu_custom_call.1} parent=1 // pred_check
      _
    $region7: #{tpu_custom_call.1} parent=1 // pred_check_branch
      %28 = sbr.rel (0) target = $region9
    $region8: #{tpu_custom_call.1} parent=1 // pred_region
      %30 = vsyncadd [#allocation6], 0
      %s31 = sshll.u32 %s1, 4
      %s32 = int_to_ptr.hbm [resolvable:$true] %s31
      %s33 = sshll.u32 [#allocation5], 4
      %s34 = int_to_ptr.vmem [resolvable:$true] %s33
      %39 = dma.hbm_to_vmem [thread:$0]  %s32, 16384, %s34, [#allocation6], 128, 128, 8
    $region9: #{tpu_custom_call.1} parent=1 // pred_fallthru
      _
    // Predicated region
    $region10: #{tpu_custom_call.1} parent=1 // pred_check
      _
    $region11: #{tpu_custom_call.1} parent=1 // pred_check_branch
      %41 = sbr.rel (0) target = $region13
    $region12: #{tpu_custom_call.1} parent=1 // pred_region
      %43 = vsyncadd [#allocation6], 0
      %s45 = sshll.u32 %s2, 4
      %s46 = int_to_ptr.hbm [resolvable:$true] %s45
      %s47 = sshll.u32 [#allocation7], 4
      %s48 = int_to_ptr.vmem [resolvable:$true] %s47
      %50 = dma.hbm_to_vmem [thread:$0]  %s46, 32, %s48, [#allocation6]
    $region13: #{tpu_custom_call.1} parent=1 // pred_fallthru
      _
    // Predicated region
    $region14: #{tpu_custom_call.1} parent=1 // pred_check
      _
    $region15: #{tpu_custom_call.1} parent=1 // pred_check_branch
      %52 = sbr.rel (0) target = $region17
    $region16: #{tpu_custom_call.1} parent=1 // pred_region
      %54 = vsyncadd [#allocation9], 0
      %s55 = sshll.u32 %s3, 4
      %s56 = int_to_ptr.hbm [resolvable:$true] %s55
      %s57 = sshll.u32 [#allocation8], 4
      %s58 = int_to_ptr.vmem [resolvable:$true] %s57
      %63 = dma.hbm_to_vmem [thread:$0]  %s56, 2048, %s58, [#allocation9], 64, 64, 4
    $region17: #{tpu_custom_call.1} parent=1 // pred_fallthru
      _
    // Predicated region
    $region18: #{tpu_custom_call.1} parent=1 // pred_check
      _
    $region19: #{tpu_custom_call.1} parent=1 // pred_check_branch
      %65 = sbr.rel (0) target = $region21
    $region20: #{tpu_custom_call.1} parent=1 // pred_region
      _
    $region21: #{tpu_custom_call.1} parent=1 // pred_fallthru
      _
    // Predicated region
    $region22: #{tpu_custom_call.1} parent=1 // pred_check
      _
    $region23: #{tpu_custom_call.1} parent=1 // pred_check_branch
      %67 = sbr.rel (0) target = $region25
    $region24: #{tpu_custom_call.1} parent=1 // pred_region
      %69 = dma.done [#allocation3], 2048
    $region25: #{tpu_custom_call.1} parent=1 // pred_fallthru
      _
    // Predicated region
    $region26: #{tpu_custom_call.1} parent=1 // pred_check
      _
    $region27: #{tpu_custom_call.1} parent=1 // pred_check_branch
      %71 = sbr.rel (0) target = $region29
    $region28: #{tpu_custom_call.1} parent=1 // pred_region
      %73 = dma.done [#allocation6], 16384
    $region29: #{tpu_custom_call.1} parent=1 // pred_fallthru
      _
    // Predicated region
    $region30: #{tpu_custom_call.1} parent=1 // pred_check
      _
    $region31: #{tpu_custom_call.1} parent=1 // pred_check_branch
      %75 = sbr.rel (0) target = $region33
    $region32: #{tpu_custom_call.1} parent=1 // pred_region
      %77 = dma.done [#allocation6], 32
    $region33: #{tpu_custom_call.1} parent=1 // pred_fallthru
      _
    // Predicated region
    $region34: #{tpu_custom_call.1} parent=1 // pred_check
      _
    $region35: #{tpu_custom_call.1} parent=1 // pred_check_branch
      %79 = sbr.rel (0) target = $region37
    $region36: #{tpu_custom_call.1} parent=1 // pred_region
      %81 = dma.done [#allocation9], 2048
    $region37: #{tpu_custom_call.1} parent=1 // pred_fallthru
      _
    %v82 = vld [vmem:[#allocation2] sm:$0xff]
    %v83 = vld [vmem:[#allocation2 + $0x8] sm:$0xff]
    %v84 = vld [vmem:[#allocation2 + $0x10] sm:$0xff]
    %v85 = vld [vmem:[#allocation2 + $0x18] sm:$0xff]
    %v86 = vld [vmem:[#allocation2 + $0x20] sm:$0xff]
    %v87 = vld [vmem:[#allocation2 + $0x28] sm:$0xff]
    %v88 = vld [vmem:[#allocation2 + $0x30] sm:$0xff]
    %v89 = vld [vmem:[#allocation2 + $0x38] sm:$0xff]
    %v90 = vld [vmem:[#allocation2 + $0x40] sm:$0xff]
    %v91 = vld [vmem:[#allocation2 + $0x48] sm:$0xff]
    %v92 = vld [vmem:[#allocation2 + $0x50] sm:$0xff]
    %v93 = vld [vmem:[#allocation2 + $0x58] sm:$0xff]
    %v94 = vld [vmem:[#allocation2 + $0x60] sm:$0xff]
    %v95 = vld [vmem:[#allocation2 + $0x68] sm:$0xff]
    %v96 = vld [vmem:[#allocation2 + $0x70] sm:$0xff]
    %v97 = vld [vmem:[#allocation2 + $0x78] sm:$0xff]
    %v98 = vpack.c.bf16 %v90, %v82
    %v99 = vpack.c.bf16 %v91, %v83
    %v100 = vpack.c.bf16 %v92, %v84
    %v101 = vpack.c.bf16 %v93, %v85
    %v102 = vpack.c.bf16 %v94, %v86
    %v103 = vpack.c.bf16 %v95, %v87
    %v104 = vpack.c.bf16 %v96, %v88
    %v105 = vpack.c.bf16 %v97, %v89
    %v106 = vld [vmem:[#allocation5] sm:$0xff]
    %v107 = vld [vmem:[#allocation5 + $0x8] sm:$0xff]
    %v108 = vld [vmem:[#allocation5 + $0x10] sm:$0xff]
    %v109 = vld [vmem:[#allocation5 + $0x18] sm:$0xff]
    %v110 = vld [vmem:[#allocation5 + $0x20] sm:$0xff]
    %v111 = vld [vmem:[#allocation5 + $0x28] sm:$0xff]
    %v112 = vld [vmem:[#allocation5 + $0x30] sm:$0xff]
    %v113 = vld [vmem:[#allocation5 + $0x38] sm:$0xff]
    %v114 = vld [vmem:[#allocation5 + $0x40] sm:$0xff]
    %v115 = vld [vmem:[#allocation5 + $0x48] sm:$0xff]
    %v116 = vld [vmem:[#allocation5 + $0x50] sm:$0xff]
    %v117 = vld [vmem:[#allocation5 + $0x58] sm:$0xff]
    %v118 = vld [vmem:[#allocation5 + $0x60] sm:$0xff]
    %v119 = vld [vmem:[#allocation5 + $0x68] sm:$0xff]
    %v120 = vld [vmem:[#allocation5 + $0x70] sm:$0xff]
    %v121 = vld [vmem:[#allocation5 + $0x78] sm:$0xff]
    %v122 = vld [vmem:[#allocation5 + $0x80] sm:$0xff]
    %v123 = vld [vmem:[#allocation5 + $0x88] sm:$0xff]
    %v124 = vld [vmem:[#allocation5 + $0x90] sm:$0xff]
    %v125 = vld [vmem:[#allocation5 + $0x98] sm:$0xff]
    %v126 = vld [vmem:[#allocation5 + $0xa0] sm:$0xff]
    %v127 = vld [vmem:[#allocation5 + $0xa8] sm:$0xff]
    %v128 = vld [vmem:[#allocation5 + $0xb0] sm:$0xff]
    %v129 = vld [vmem:[#allocation5 + $0xb8] sm:$0xff]
    %v130 = vld [vmem:[#allocation5 + $0xc0] sm:$0xff]
    %v131 = vld [vmem:[#allocation5 + $0xc8] sm:$0xff]
    %v132 = vld [vmem:[#allocation5 + $0xd0] sm:$0xff]
    %v133 = vld [vmem:[#allocation5 + $0xd8] sm:$0xff]
    %v134 = vld [vmem:[#allocation5 + $0xe0] sm:$0xff]
    %v135 = vld [vmem:[#allocation5 + $0xe8] sm:$0xff]
    %v136 = vld [vmem:[#allocation5 + $0xf0] sm:$0xff]
    %v137 = vld [vmem:[#allocation5 + $0xf8] sm:$0xff]
    %v138 = vld [vmem:[#allocation5 + $0x100] sm:$0xff]
    %v139 = vld [vmem:[#allocation5 + $0x108] sm:$0xff]
    %v140 = vld [vmem:[#allocation5 + $0x110] sm:$0xff]
    %v141 = vld [vmem:[#allocation5 + $0x118] sm:$0xff]
    %v142 = vld [vmem:[#allocation5 + $0x120] sm:$0xff]
    %v143 = vld [vmem:[#allocation5 + $0x128] sm:$0xff]
    %v144 = vld [vmem:[#allocation5 + $0x130] sm:$0xff]
    %v145 = vld [vmem:[#allocation5 + $0x138] sm:$0xff]
    %v146 = vld [vmem:[#allocation5 + $0x140] sm:$0xff]
    %v147 = vld [vmem:[#allocation5 + $0x148] sm:$0xff]
    %v148 = vld [vmem:[#allocation5 + $0x150] sm:$0xff]
    %v149 = vld [vmem:[#allocation5 + $0x158] sm:$0xff]
    %v150 = vld [vmem:[#allocation5 + $0x160] sm:$0xff]
    %v151 = vld [vmem:[#allocation5 + $0x168] sm:$0xff]
    %v152 = vld [vmem:[#allocation5 + $0x170] sm:$0xff]
    %v153 = vld [vmem:[#allocation5 + $0x178] sm:$0xff]
    %v154 = vld [vmem:[#allocation5 + $0x180] sm:$0xff]
    %v155 = vld [vmem:[#allocation5 + $0x188] sm:$0xff]
    %v156 = vld [vmem:[#allocation5 + $0x190] sm:$0xff]
    %v157 = vld [vmem:[#allocation5 + $0x198] sm:$0xff]
    %v158 = vld [vmem:[#allocation5 + $0x1a0] sm:$0xff]
    %v159 = vld [vmem:[#allocation5 + $0x1a8] sm:$0xff]
    %v160 = vld [vmem:[#allocation5 + $0x1b0] sm:$0xff]
    %v161 = vld [vmem:[#allocation5 + $0x1b8] sm:$0xff]
    %v162 = vld [vmem:[#allocation5 + $0x1c0] sm:$0xff]
    %v163 = vld [vmem:[#allocation5 + $0x1c8] sm:$0xff]
    %v164 = vld [vmem:[#allocation5 + $0x1d0] sm:$0xff]
    %v165 = vld [vmem:[#allocation5 + $0x1d8] sm:$0xff]
    %v166 = vld [vmem:[#allocation5 + $0x1e0] sm:$0xff]
    %v167 = vld [vmem:[#allocation5 + $0x1e8] sm:$0xff]
    %v168 = vld [vmem:[#allocation5 + $0x1f0] sm:$0xff]
    %v169 = vld [vmem:[#allocation5 + $0x1f8] sm:$0xff]
    %v170 = vld [vmem:[#allocation5 + $0x200] sm:$0xff]
    %v171 = vld [vmem:[#allocation5 + $0x208] sm:$0xff]
    %v172 = vld [vmem:[#allocation5 + $0x210] sm:$0xff]
    %v173 = vld [vmem:[#allocation5 + $0x218] sm:$0xff]
    %v174 = vld [vmem:[#allocation5 + $0x220] sm:$0xff]
    %v175 = vld [vmem:[#allocation5 + $0x228] sm:$0xff]
    %v176 = vld [vmem:[#allocation5 + $0x230] sm:$0xff]
    %v177 = vld [vmem:[#allocation5 + $0x238] sm:$0xff]
    %v178 = vld [vmem:[#allocation5 + $0x240] sm:$0xff]
    %v179 = vld [vmem:[#allocation5 + $0x248] sm:$0xff]
    %v180 = vld [vmem:[#allocation5 + $0x250] sm:$0xff]
    %v181 = vld [vmem:[#allocation5 + $0x258] sm:$0xff]
    %v182 = vld [vmem:[#allocation5 + $0x260] sm:$0xff]
    %v183 = vld [vmem:[#allocation5 + $0x268] sm:$0xff]
    %v184 = vld [vmem:[#allocation5 + $0x270] sm:$0xff]
    %v185 = vld [vmem:[#allocation5 + $0x278] sm:$0xff]
    %v186 = vld [vmem:[#allocation5 + $0x280] sm:$0xff]
    %v187 = vld [vmem:[#allocation5 + $0x288] sm:$0xff]
    %v188 = vld [vmem:[#allocation5 + $0x290] sm:$0xff]
    %v189 = vld [vmem:[#allocation5 + $0x298] sm:$0xff]
    %v190 = vld [vmem:[#allocation5 + $0x2a0] sm:$0xff]
    %v191 = vld [vmem:[#allocation5 + $0x2a8] sm:$0xff]
    %v192 = vld [vmem:[#allocation5 + $0x2b0] sm:$0xff]
    %v193 = vld [vmem:[#allocation5 + $0x2b8] sm:$0xff]
    %v194 = vld [vmem:[#allocation5 + $0x2c0] sm:$0xff]
    %v195 = vld [vmem:[#allocation5 + $0x2c8] sm:$0xff]
    %v196 = vld [vmem:[#allocation5 + $0x2d0] sm:$0xff]
    %v197 = vld [vmem:[#allocation5 + $0x2d8] sm:$0xff]
    %v198 = vld [vmem:[#allocation5 + $0x2e0] sm:$0xff]
    %v199 = vld [vmem:[#allocation5 + $0x2e8] sm:$0xff]
    %v200 = vld [vmem:[#allocation5 + $0x2f0] sm:$0xff]
    %v201 = vld [vmem:[#allocation5 + $0x2f8] sm:$0xff]
    %v202 = vld [vmem:[#allocation5 + $0x300] sm:$0xff]
    %v203 = vld [vmem:[#allocation5 + $0x308] sm:$0xff]
    %v204 = vld [vmem:[#allocation5 + $0x310] sm:$0xff]
    %v205 = vld [vmem:[#allocation5 + $0x318] sm:$0xff]
    %v206 = vld [vmem:[#allocation5 + $0x320] sm:$0xff]
    %v207 = vld [vmem:[#allocation5 + $0x328] sm:$0xff]
    %v208 = vld [vmem:[#allocation5 + $0x330] sm:$0xff]
    %v209 = vld [vmem:[#allocation5 + $0x338] sm:$0xff]
    %v210 = vld [vmem:[#allocation5 + $0x340] sm:$0xff]
    %v211 = vld [vmem:[#allocation5 + $0x348] sm:$0xff]
    %v212 = vld [vmem:[#allocation5 + $0x350] sm:$0xff]
    %v213 = vld [vmem:[#allocation5 + $0x358] sm:$0xff]
    %v214 = vld [vmem:[#allocation5 + $0x360] sm:$0xff]
    %v215 = vld [vmem:[#allocation5 + $0x368] sm:$0xff]
    %v216 = vld [vmem:[#allocation5 + $0x370] sm:$0xff]
    %v217 = vld [vmem:[#allocation5 + $0x378] sm:$0xff]
    %v218 = vld [vmem:[#allocation5 + $0x380] sm:$0xff]
    %v219 = vld [vmem:[#allocation5 + $0x388] sm:$0xff]
    %v220 = vld [vmem:[#allocation5 + $0x390] sm:$0xff]
    %v221 = vld [vmem:[#allocation5 + $0x398] sm:$0xff]
    %v222 = vld [vmem:[#allocation5 + $0x3a0] sm:$0xff]
    %v223 = vld [vmem:[#allocation5 + $0x3a8] sm:$0xff]
    %v224 = vld [vmem:[#allocation5 + $0x3b0] sm:$0xff]
    %v225 = vld [vmem:[#allocation5 + $0x3b8] sm:$0xff]
    %v226 = vld [vmem:[#allocation5 + $0x3c0] sm:$0xff]
    %v227 = vld [vmem:[#allocation5 + $0x3c8] sm:$0xff]
    %v228 = vld [vmem:[#allocation5 + $0x3d0] sm:$0xff]
    %v229 = vld [vmem:[#allocation5 + $0x3d8] sm:$0xff]
    %v230 = vld [vmem:[#allocation5 + $0x3e0] sm:$0xff]
    %v231 = vld [vmem:[#allocation5 + $0x3e8] sm:$0xff]
    %v232 = vld [vmem:[#allocation5 + $0x3f0] sm:$0xff]
    %v233 = vld [vmem:[#allocation5 + $0x3f8] sm:$0xff]
    %v234 = vld [vmem:[#allocation7] sm:$0x3]
    %v236 = vperm.slane %v234, 0
    %v237 = vperm.slane %v234, 1
    %v368 = vunpack.c.l.b16 %v106
    %v369 = vunpack.c.h.b16 %v106
    %v370 = vunpack.c.l.b16 %v107
    %v371 = vunpack.c.h.b16 %v107
    %v372 = vunpack.c.l.b16 %v108
    %v373 = vunpack.c.h.b16 %v108
    %v374 = vunpack.c.l.b16 %v109
    %v375 = vunpack.c.h.b16 %v109
    %v376 = vunpack.c.l.b16 %v110
    %v377 = vunpack.c.h.b16 %v110
    %v378 = vunpack.c.l.b16 %v111
    %v379 = vunpack.c.h.b16 %v111
    %v380 = vunpack.c.l.b16 %v112
    %v381 = vunpack.c.h.b16 %v112
    %v382 = vunpack.c.l.b16 %v113
    %v383 = vunpack.c.h.b16 %v113
    %v384 = vunpack.c.l.b16 %v114
    %v385 = vunpack.c.h.b16 %v114
    %v386 = vunpack.c.l.b16 %v115
    %v387 = vunpack.c.h.b16 %v115
    %v388 = vunpack.c.l.b16 %v116
    %v389 = vunpack.c.h.b16 %v116
    %v390 = vunpack.c.l.b16 %v117
    %v391 = vunpack.c.h.b16 %v117
    %v392 = vunpack.c.l.b16 %v118
    %v393 = vunpack.c.h.b16 %v118
    %v394 = vunpack.c.l.b16 %v119
    %v395 = vunpack.c.h.b16 %v119
    %v396 = vunpack.c.l.b16 %v120
    %v397 = vunpack.c.h.b16 %v120
    %v398 = vunpack.c.l.b16 %v121
    %v399 = vunpack.c.h.b16 %v121
    %v400 = vunpack.c.l.b16 %v122
    %v401 = vunpack.c.h.b16 %v122
    %v402 = vunpack.c.l.b16 %v123
    %v403 = vunpack.c.h.b16 %v123
    %v404 = vunpack.c.l.b16 %v124
    %v405 = vunpack.c.h.b16 %v124
    %v406 = vunpack.c.l.b16 %v125
    %v407 = vunpack.c.h.b16 %v125
    %v408 = vunpack.c.l.b16 %v126
    %v409 = vunpack.c.h.b16 %v126
    %v410 = vunpack.c.l.b16 %v127
    %v411 = vunpack.c.h.b16 %v127
    %v412 = vunpack.c.l.b16 %v128
    %v413 = vunpack.c.h.b16 %v128
    %v414 = vunpack.c.l.b16 %v129
    %v415 = vunpack.c.h.b16 %v129
    %v416 = vunpack.c.l.b16 %v130
    %v417 = vunpack.c.h.b16 %v130
    %v418 = vunpack.c.l.b16 %v131
    %v419 = vunpack.c.h.b16 %v131
    %v420 = vunpack.c.l.b16 %v132
    %v421 = vunpack.c.h.b16 %v132
    %v422 = vunpack.c.l.b16 %v133
    %v423 = vunpack.c.h.b16 %v133
    %v424 = vunpack.c.l.b16 %v134
    %v425 = vunpack.c.h.b16 %v134
    %v426 = vunpack.c.l.b16 %v135
    %v427 = vunpack.c.h.b16 %v135
    %v428 = vunpack.c.l.b16 %v136
    %v429 = vunpack.c.h.b16 %v136
    %v430 = vunpack.c.l.b16 %v137
    %v431 = vunpack.c.h.b16 %v137
    %v432 = vunpack.c.l.b16 %v138
    %v433 = vunpack.c.h.b16 %v138
    %v434 = vunpack.c.l.b16 %v139
    %v435 = vunpack.c.h.b16 %v139
    %v436 = vunpack.c.l.b16 %v140
    %v437 = vunpack.c.h.b16 %v140
    %v438 = vunpack.c.l.b16 %v141
    %v439 = vunpack.c.h.b16 %v141
    %v440 = vunpack.c.l.b16 %v142
    %v441 = vunpack.c.h.b16 %v142
    %v442 = vunpack.c.l.b16 %v143
    %v443 = vunpack.c.h.b16 %v143
    %v444 = vunpack.c.l.b16 %v144
    %v445 = vunpack.c.h.b16 %v144
    %v446 = vunpack.c.l.b16 %v145
    %v447 = vunpack.c.h.b16 %v145
    %v448 = vunpack.c.l.b16 %v146
    %v449 = vunpack.c.h.b16 %v146
    %v450 = vunpack.c.l.b16 %v147
    %v451 = vunpack.c.h.b16 %v147
    %v452 = vunpack.c.l.b16 %v148
    %v453 = vunpack.c.h.b16 %v148
    %v454 = vunpack.c.l.b16 %v149
    %v455 = vunpack.c.h.b16 %v149
    %v456 = vunpack.c.l.b16 %v150
    %v457 = vunpack.c.h.b16 %v150
    %v458 = vunpack.c.l.b16 %v151
    %v459 = vunpack.c.h.b16 %v151
    %v460 = vunpack.c.l.b16 %v152
    %v461 = vunpack.c.h.b16 %v152
    %v462 = vunpack.c.l.b16 %v153
    %v463 = vunpack.c.h.b16 %v153
    %v464 = vunpack.c.l.b16 %v154
    %v465 = vunpack.c.h.b16 %v154
    %v466 = vunpack.c.l.b16 %v155
    %v467 = vunpack.c.h.b16 %v155
    %v468 = vunpack.c.l.b16 %v156
    %v469 = vunpack.c.h.b16 %v156
    %v470 = vunpack.c.l.b16 %v157
    %v471 = vunpack.c.h.b16 %v157
    %v472 = vunpack.c.l.b16 %v158
    %v473 = vunpack.c.h.b16 %v158
    %v474 = vunpack.c.l.b16 %v159
    %v475 = vunpack.c.h.b16 %v159
    %v476 = vunpack.c.l.b16 %v160
    %v477 = vunpack.c.h.b16 %v160
    %v478 = vunpack.c.l.b16 %v161
    %v479 = vunpack.c.h.b16 %v161
    %v480 = vunpack.c.l.b16 %v162
    %v481 = vunpack.c.h.b16 %v162
    %v482 = vunpack.c.l.b16 %v163
    %v483 = vunpack.c.h.b16 %v163
    %v484 = vunpack.c.l.b16 %v164
    %v485 = vunpack.c.h.b16 %v164
    %v486 = vunpack.c.l.b16 %v165
    %v487 = vunpack.c.h.b16 %v165
    %v488 = vunpack.c.l.b16 %v166
    %v489 = vunpack.c.h.b16 %v166
    %v490 = vunpack.c.l.b16 %v167
    %v491 = vunpack.c.h.b16 %v167
    %v492 = vunpack.c.l.b16 %v168
    %v493 = vunpack.c.h.b16 %v168
    %v494 = vunpack.c.l.b16 %v169
    %v495 = vunpack.c.h.b16 %v169
    %v496 = vunpack.c.l.b16 %v170
    %v497 = vunpack.c.h.b16 %v170
    %v498 = vunpack.c.l.b16 %v171
    %v499 = vunpack.c.h.b16 %v171
    %v500 = vunpack.c.l.b16 %v172
    %v501 = vunpack.c.h.b16 %v172
    %v502 = vunpack.c.l.b16 %v173
    %v503 = vunpack.c.h.b16 %v173
    %v504 = vunpack.c.l.b16 %v174
    %v505 = vunpack.c.h.b16 %v174
    %v506 = vunpack.c.l.b16 %v175
    %v507 = vunpack.c.h.b16 %v175
    %v508 = vunpack.c.l.b16 %v176
    %v509 = vunpack.c.h.b16 %v176
    %v510 = vunpack.c.l.b16 %v177
    %v511 = vunpack.c.h.b16 %v177
    %v512 = vunpack.c.l.b16 %v178
    %v513 = vunpack.c.h.b16 %v178
    %v514 = vunpack.c.l.b16 %v179
    %v515 = vunpack.c.h.b16 %v179
    %v516 = vunpack.c.l.b16 %v180
    %v517 = vunpack.c.h.b16 %v180
    %v518 = vunpack.c.l.b16 %v181
    %v519 = vunpack.c.h.b16 %v181
    %v520 = vunpack.c.l.b16 %v182
    %v521 = vunpack.c.h.b16 %v182
    %v522 = vunpack.c.l.b16 %v183
    %v523 = vunpack.c.h.b16 %v183
    %v524 = vunpack.c.l.b16 %v184
    %v525 = vunpack.c.h.b16 %v184
    %v526 = vunpack.c.l.b16 %v185
    %v527 = vunpack.c.h.b16 %v185
    %v528 = vunpack.c.l.b16 %v186
    %v529 = vunpack.c.h.b16 %v186
    %v530 = vunpack.c.l.b16 %v187
    %v531 = vunpack.c.h.b16 %v187
    %v532 = vunpack.c.l.b16 %v188
    %v533 = vunpack.c.h.b16 %v188
    %v534 = vunpack.c.l.b16 %v189
    %v535 = vunpack.c.h.b16 %v189
    %v536 = vunpack.c.l.b16 %v190
    %v537 = vunpack.c.h.b16 %v190
    %v538 = vunpack.c.l.b16 %v191
    %v539 = vunpack.c.h.b16 %v191
    %v540 = vunpack.c.l.b16 %v192
    %v541 = vunpack.c.h.b16 %v192
    %v542 = vunpack.c.l.b16 %v193
    %v543 = vunpack.c.h.b16 %v193
    %v544 = vunpack.c.l.b16 %v194
    %v545 = vunpack.c.h.b16 %v194
    %v546 = vunpack.c.l.b16 %v195
    %v547 = vunpack.c.h.b16 %v195
    %v548 = vunpack.c.l.b16 %v196
    %v549 = vunpack.c.h.b16 %v196
    %v550 = vunpack.c.l.b16 %v197
    %v551 = vunpack.c.h.b16 %v197
    %v552 = vunpack.c.l.b16 %v198
    %v553 = vunpack.c.h.b16 %v198
    %v554 = vunpack.c.l.b16 %v199
    %v555 = vunpack.c.h.b16 %v199
    %v556 = vunpack.c.l.b16 %v200
    %v557 = vunpack.c.h.b16 %v200
    %v558 = vunpack.c.l.b16 %v201
    %v559 = vunpack.c.h.b16 %v201
    %v560 = vunpack.c.l.b16 %v202
    %v561 = vunpack.c.h.b16 %v202
    %v562 = vunpack.c.l.b16 %v203
    %v563 = vunpack.c.h.b16 %v203
    %v564 = vunpack.c.l.b16 %v204
    %v565 = vunpack.c.h.b16 %v204
    %v566 = vunpack.c.l.b16 %v205
    %v567 = vunpack.c.h.b16 %v205
    %v568 = vunpack.c.l.b16 %v206
    %v569 = vunpack.c.h.b16 %v206
    %v570 = vunpack.c.l.b16 %v207
    %v571 = vunpack.c.h.b16 %v207
    %v572 = vunpack.c.l.b16 %v208
    %v573 = vunpack.c.h.b16 %v208
    %v574 = vunpack.c.l.b16 %v209
    %v575 = vunpack.c.h.b16 %v209
    %v576 = vunpack.c.l.b16 %v210
    %v577 = vunpack.c.h.b16 %v210
    %v578 = vunpack.c.l.b16 %v211
    %v579 = vunpack.c.h.b16 %v211
    %v580 = vunpack.c.l.b16 %v212
    %v581 = vunpack.c.h.b16 %v212
    %v582 = vunpack.c.l.b16 %v213
    %v583 = vunpack.c.h.b16 %v213
    %v584 = vunpack.c.l.b16 %v214
    %v585 = vunpack.c.h.b16 %v214
    %v586 = vunpack.c.l.b16 %v215
    %v587 = vunpack.c.h.b16 %v215
    %v588 = vunpack.c.l.b16 %v216
    %v589 = vunpack.c.h.b16 %v216
    %v590 = vunpack.c.l.b16 %v217
    %v591 = vunpack.c.h.b16 %v217
    %v592 = vunpack.c.l.b16 %v218
    %v593 = vunpack.c.h.b16 %v218
    %v594 = vunpack.c.l.b16 %v219
    %v595 = vunpack.c.h.b16 %v219
    %v596 = vunpack.c.l.b16 %v220
    %v597 = vunpack.c.h.b16 %v220
    %v598 = vunpack.c.l.b16 %v221
    %v599 = vunpack.c.h.b16 %v221
    %v600 = vunpack.c.l.b16 %v222
    %v601 = vunpack.c.h.b16 %v222
    %v602 = vunpack.c.l.b16 %v223
    %v603 = vunpack.c.h.b16 %v223
    %v604 = vunpack.c.l.b16 %v224
    %v605 = vunpack.c.h.b16 %v224
    %v606 = vunpack.c.l.b16 %v225
    %v607 = vunpack.c.h.b16 %v225
    %v608 = vunpack.c.l.b16 %v226
    %v609 = vunpack.c.h.b16 %v226
    %v610 = vunpack.c.l.b16 %v227
    %v611 = vunpack.c.h.b16 %v227
    %v612 = vunpack.c.l.b16 %v228
    %v613 = vunpack.c.h.b16 %v228
    %v614 = vunpack.c.l.b16 %v229
    %v615 = vunpack.c.h.b16 %v229
    %v616 = vunpack.c.l.b16 %v230
    %v617 = vunpack.c.h.b16 %v230
    %v618 = vunpack.c.l.b16 %v231
    %v619 = vunpack.c.h.b16 %v231
    %v620 = vunpack.c.l.b16 %v232
    %v621 = vunpack.c.h.b16 %v232
    %v622 = vunpack.c.l.b16 %v233
    %v623 = vunpack.c.h.b16 %v233
    %v624 = vpack.c.b16 %v370, %v368
    %v625 = vpack.c.b16 %v371, %v369
    %v626 = vpack.c.b16 %v374, %v372
    %v627 = vpack.c.b16 %v375, %v373
    %v628 = vpack.c.b16 %v378, %v376
    %v629 = vpack.c.b16 %v379, %v377
    %v630 = vpack.c.b16 %v382, %v380
    %v631 = vpack.c.b16 %v383, %v381
    %v632 = vpack.c.b16 %v386, %v384
    %v633 = vpack.c.b16 %v387, %v385
    %v634 = vpack.c.b16 %v390, %v388
    %v635 = vpack.c.b16 %v391, %v389
    %v636 = vpack.c.b16 %v394, %v392
    %v637 = vpack.c.b16 %v395, %v393
    %v638 = vpack.c.b16 %v398, %v396
    %v639 = vpack.c.b16 %v399, %v397
    %v640 = vpack.c.b16 %v402, %v400
    %v641 = vpack.c.b16 %v403, %v401
    %v642 = vpack.c.b16 %v406, %v404
    %v643 = vpack.c.b16 %v407, %v405
    %v644 = vpack.c.b16 %v410, %v408
    %v645 = vpack.c.b16 %v411, %v409
    %v646 = vpack.c.b16 %v414, %v412
    %v647 = vpack.c.b16 %v415, %v413
    %v648 = vpack.c.b16 %v418, %v416
    %v649 = vpack.c.b16 %v419, %v417
    %v650 = vpack.c.b16 %v422, %v420
    %v651 = vpack.c.b16 %v423, %v421
    %v652 = vpack.c.b16 %v426, %v424
    %v653 = vpack.c.b16 %v427, %v425
    %v654 = vpack.c.b16 %v430, %v428
    %v655 = vpack.c.b16 %v431, %v429
    %v656 = vpack.c.b16 %v434, %v432
    %v657 = vpack.c.b16 %v435, %v433
    %v658 = vpack.c.b16 %v438, %v436
    %v659 = vpack.c.b16 %v439, %v437
    %v660 = vpack.c.b16 %v442, %v440
    %v661 = vpack.c.b16 %v443, %v441
    %v662 = vpack.c.b16 %v446, %v444
    %v663 = vpack.c.b16 %v447, %v445
    %v664 = vpack.c.b16 %v450, %v448
    %v665 = vpack.c.b16 %v451, %v449
    %v666 = vpack.c.b16 %v454, %v452
    %v667 = vpack.c.b16 %v455, %v453
    %v668 = vpack.c.b16 %v458, %v456
    %v669 = vpack.c.b16 %v459, %v457
    %v670 = vpack.c.b16 %v462, %v460
    %v671 = vpack.c.b16 %v463, %v461
    %v672 = vpack.c.b16 %v466, %v464
    %v673 = vpack.c.b16 %v467, %v465
    %v674 = vpack.c.b16 %v470, %v468
    %v675 = vpack.c.b16 %v471, %v469
    %v676 = vpack.c.b16 %v474, %v472
    %v677 = vpack.c.b16 %v475, %v473
    %v678 = vpack.c.b16 %v478, %v476
    %v679 = vpack.c.b16 %v479, %v477
    %v680 = vpack.c.b16 %v482, %v480
    %v681 = vpack.c.b16 %v483, %v481
    %v682 = vpack.c.b16 %v486, %v484
    %v683 = vpack.c.b16 %v487, %v485
    %v684 = vpack.c.b16 %v490, %v488
    %v685 = vpack.c.b16 %v491, %v489
    %v686 = vpack.c.b16 %v494, %v492
    %v687 = vpack.c.b16 %v495, %v493
    %v688 = vpack.c.b16 %v498, %v496
    %v689 = vpack.c.b16 %v499, %v497
    %v690 = vpack.c.b16 %v502, %v500
    %v691 = vpack.c.b16 %v503, %v501
    %v692 = vpack.c.b16 %v506, %v504
    %v693 = vpack.c.b16 %v507, %v505
    %v694 = vpack.c.b16 %v510, %v508
    %v695 = vpack.c.b16 %v511, %v509
    %v696 = vpack.c.b16 %v514, %v512
    %v697 = vpack.c.b16 %v515, %v513
    %v698 = vpack.c.b16 %v518, %v516
    %v699 = vpack.c.b16 %v519, %v517
    %v700 = vpack.c.b16 %v522, %v520
    %v701 = vpack.c.b16 %v523, %v521
    %v702 = vpack.c.b16 %v526, %v524
    %v703 = vpack.c.b16 %v527, %v525
    %v704 = vpack.c.b16 %v530, %v528
    %v705 = vpack.c.b16 %v531, %v529
    %v706 = vpack.c.b16 %v534, %v532
    %v707 = vpack.c.b16 %v535, %v533
    %v708 = vpack.c.b16 %v538, %v536
    %v709 = vpack.c.b16 %v539, %v537
    %v710 = vpack.c.b16 %v542, %v540
    %v711 = vpack.c.b16 %v543, %v541
    %v712 = vpack.c.b16 %v546, %v544
    %v713 = vpack.c.b16 %v547, %v545
    %v714 = vpack.c.b16 %v550, %v548
    %v715 = vpack.c.b16 %v551, %v549
    %v716 = vpack.c.b16 %v554, %v552
    %v717 = vpack.c.b16 %v555, %v553
    %v718 = vpack.c.b16 %v558, %v556
    %v719 = vpack.c.b16 %v559, %v557
    %v720 = vpack.c.b16 %v562, %v560
    %v721 = vpack.c.b16 %v563, %v561
    %v722 = vpack.c.b16 %v566, %v564
    %v723 = vpack.c.b16 %v567, %v565
    %v724 = vpack.c.b16 %v570, %v568
    %v725 = vpack.c.b16 %v571, %v569
    %v726 = vpack.c.b16 %v574, %v572
    %v727 = vpack.c.b16 %v575, %v573
    %v728 = vpack.c.b16 %v578, %v576
    %v729 = vpack.c.b16 %v579, %v577
    %v730 = vpack.c.b16 %v582, %v580
    %v731 = vpack.c.b16 %v583, %v581
    %v732 = vpack.c.b16 %v586, %v584
    %v733 = vpack.c.b16 %v587, %v585
    %v734 = vpack.c.b16 %v590, %v588
    %v735 = vpack.c.b16 %v591, %v589
    %v736 = vpack.c.b16 %v594, %v592
    %v737 = vpack.c.b16 %v595, %v593
    %v738 = vpack.c.b16 %v598, %v596
    %v739 = vpack.c.b16 %v599, %v597
    %v740 = vpack.c.b16 %v602, %v600
    %v741 = vpack.c.b16 %v603, %v601
    %v742 = vpack.c.b16 %v606, %v604
    %v743 = vpack.c.b16 %v607, %v605
    %v744 = vpack.c.b16 %v610, %v608
    %v745 = vpack.c.b16 %v611, %v609
    %v746 = vpack.c.b16 %v614, %v612
    %v747 = vpack.c.b16 %v615, %v613
    %v748 = vpack.c.b16 %v618, %v616
    %v749 = vpack.c.b16 %v619, %v617
    %v750 = vpack.c.b16 %v622, %v620
    %v751 = vpack.c.b16 %v623, %v621
    %880 = vmatpush.bf16.msra.mxu0 %v638
    %881 = vmatpush.bf16.msra.mxu0 %v636
    %882 = vmatpush.bf16.msra.mxu0 %v634
    %883 = vmatpush.bf16.msra.mxu0 %v632
    %884 = vmatpush.bf16.msra.mxu0 %v630
    %885 = vmatpush.bf16.msra.mxu0 %v628
    %886 = vmatpush.bf16.msra.mxu0 %v626
    %887 = vmatpush.bf16.msra.mxu0 %v624
    %888 = vmatmul.bf16.gmra.mxu0 %v98
    %v889 = vpop.f32.mrf.mxu0
    %v890 = vadd.f32 %v236, %v889
    %v891 = vpop.f32.mrf.mxu0
    %v892 = vadd.f32 %v236, %v891
    %893 = vdwg.mxu0
    %894 = vmatpush.bf16.msra.mxu0 %v654
    %895 = vmatpush.bf16.msra.mxu0 %v652
    %896 = vmatpush.bf16.msra.mxu0 %v650
    %897 = vmatpush.bf16.msra.mxu0 %v648
    %898 = vmatpush.bf16.msra.mxu0 %v646
    %899 = vmatpush.bf16.msra.mxu0 %v644
    %900 = vmatpush.bf16.msra.mxu0 %v642
    %901 = vmatpush.bf16.msra.mxu0 %v640
    %902 = vmatmul.bf16.gmra.mxu0 %v99
    %v903 = vpop.f32.mrf.mxu0
    %v904 = vadd.f32 %v890, %v903
    %v905 = vpop.f32.mrf.mxu0
    %v906 = vadd.f32 %v892, %v905
    %907 = vdwg.mxu0
    %908 = vmatpush.bf16.msra.mxu0 %v670
    %909 = vmatpush.bf16.msra.mxu0 %v668
    %910 = vmatpush.bf16.msra.mxu0 %v666
    %911 = vmatpush.bf16.msra.mxu0 %v664
    %912 = vmatpush.bf16.msra.mxu0 %v662
    %913 = vmatpush.bf16.msra.mxu0 %v660
    %914 = vmatpush.bf16.msra.mxu0 %v658
    %915 = vmatpush.bf16.msra.mxu0 %v656
    %916 = vmatmul.bf16.gmra.mxu0 %v100
    %v917 = vpop.f32.mrf.mxu0
    %v918 = vadd.f32 %v904, %v917
    %v919 = vpop.f32.mrf.mxu0
    %v920 = vadd.f32 %v906, %v919
    %921 = vdwg.mxu0
    %922 = vmatpush.bf16.msra.mxu0 %v686
    %923 = vmatpush.bf16.msra.mxu0 %v684
    %924 = vmatpush.bf16.msra.mxu0 %v682
    %925 = vmatpush.bf16.msra.mxu0 %v680
    %926 = vmatpush.bf16.msra.mxu0 %v678
    %927 = vmatpush.bf16.msra.mxu0 %v676
    %928 = vmatpush.bf16.msra.mxu0 %v674
    %929 = vmatpush.bf16.msra.mxu0 %v672
    %930 = vmatmul.bf16.gmra.mxu0 %v101
    %v931 = vpop.f32.mrf.mxu0
    %v932 = vadd.f32 %v918, %v931
    %v933 = vpop.f32.mrf.mxu0
    %v934 = vadd.f32 %v920, %v933
    %935 = vdwg.mxu0
    %936 = vmatpush.bf16.msra.mxu0 %v702
    %937 = vmatpush.bf16.msra.mxu0 %v700
    %938 = vmatpush.bf16.msra.mxu0 %v698
    %939 = vmatpush.bf16.msra.mxu0 %v696
    %940 = vmatpush.bf16.msra.mxu0 %v694
    %941 = vmatpush.bf16.msra.mxu0 %v692
    %942 = vmatpush.bf16.msra.mxu0 %v690
    %943 = vmatpush.bf16.msra.mxu0 %v688
    %944 = vmatmul.bf16.gmra.mxu0 %v102
    %v945 = vpop.f32.mrf.mxu0
    %v946 = vadd.f32 %v932, %v945
    %v947 = vpop.f32.mrf.mxu0
    %v948 = vadd.f32 %v934, %v947
    %949 = vdwg.mxu0
    %950 = vmatpush.bf16.msra.mxu0 %v718
    %951 = vmatpush.bf16.msra.mxu0 %v716
    %952 = vmatpush.bf16.msra.mxu0 %v714
    %953 = vmatpush.bf16.msra.mxu0 %v712
    %954 = vmatpush.bf16.msra.mxu0 %v710
    %955 = vmatpush.bf16.msra.mxu0 %v708
    %956 = vmatpush.bf16.msra.mxu0 %v706
    %957 = vmatpush.bf16.msra.mxu0 %v704
    %958 = vmatmul.bf16.gmra.mxu0 %v103
    %v959 = vpop.f32.mrf.mxu0
    %v960 = vadd.f32 %v946, %v959
    %v961 = vpop.f32.mrf.mxu0
    %v962 = vadd.f32 %v948, %v961
    %963 = vdwg.mxu0
    %964 = vmatpush.bf16.msra.mxu0 %v734
    %965 = vmatpush.bf16.msra.mxu0 %v732
    %966 = vmatpush.bf16.msra.mxu0 %v730
    %967 = vmatpush.bf16.msra.mxu0 %v728
    %968 = vmatpush.bf16.msra.mxu0 %v726
    %969 = vmatpush.bf16.msra.mxu0 %v724
    %970 = vmatpush.bf16.msra.mxu0 %v722
    %971 = vmatpush.bf16.msra.mxu0 %v720
    %972 = vmatmul.bf16.gmra.mxu0 %v104
    %v973 = vpop.f32.mrf.mxu0
    %v974 = vadd.f32 %v960, %v973
    %v975 = vpop.f32.mrf.mxu0
    %v976 = vadd.f32 %v962, %v975
    %977 = vdwg.mxu0
    %978 = vmatpush.bf16.msra.mxu0 %v750
    %979 = vmatpush.bf16.msra.mxu0 %v748
    %980 = vmatpush.bf16.msra.mxu0 %v746
    %981 = vmatpush.bf16.msra.mxu0 %v744
    %982 = vmatpush.bf16.msra.mxu0 %v742
    %983 = vmatpush.bf16.msra.mxu0 %v740
    %984 = vmatpush.bf16.msra.mxu0 %v738
    %985 = vmatpush.bf16.msra.mxu0 %v736
    %986 = vmatmul.bf16.gmra.mxu0 %v105
    %v987 = vpop.f32.mrf.mxu0
    %v988 = vadd.f32 %v974, %v987
    %v989 = vpop.f32.mrf.mxu0
    %v990 = vadd.f32 %v976, %v989
    %991 = vdwg.mxu0
    %992 = vmatpush.bf16.msra.mxu0 %v639
    %993 = vmatpush.bf16.msra.mxu0 %v637
    %994 = vmatpush.bf16.msra.mxu0 %v635
    %995 = vmatpush.bf16.msra.mxu0 %v633
    %996 = vmatpush.bf16.msra.mxu0 %v631
    %997 = vmatpush.bf16.msra.mxu0 %v629
    %998 = vmatpush.bf16.msra.mxu0 %v627
    %999 = vmatpush.bf16.msra.mxu0 %v625
    %1000 = vmatmul.bf16.gmra.mxu0 %v98
    %v1001 = vpop.f32.mrf.mxu0
    %v1002 = vadd.f32 %v237, %v1001
    %v1003 = vpop.f32.mrf.mxu0
    %v1004 = vadd.f32 %v237, %v1003
    %1005 = vdwg.mxu0
    %1006 = vmatpush.bf16.msra.mxu0 %v655
    %1007 = vmatpush.bf16.msra.mxu0 %v653
    %1008 = vmatpush.bf16.msra.mxu0 %v651
    %1009 = vmatpush.bf16.msra.mxu0 %v649
    %1010 = vmatpush.bf16.msra.mxu0 %v647
    %1011 = vmatpush.bf16.msra.mxu0 %v645
    %1012 = vmatpush.bf16.msra.mxu0 %v643
    %1013 = vmatpush.bf16.msra.mxu0 %v641
    %1014 = vmatmul.bf16.gmra.mxu0 %v99
    %v1015 = vpop.f32.mrf.mxu0
    %v1016 = vadd.f32 %v1002, %v1015
    %v1017 = vpop.f32.mrf.mxu0
    %v1018 = vadd.f32 %v1004, %v1017
    %1019 = vdwg.mxu0
    %1020 = vmatpush.bf16.msra.mxu0 %v671
    %1021 = vmatpush.bf16.msra.mxu0 %v669
    %1022 = vmatpush.bf16.msra.mxu0 %v667
    %1023 = vmatpush.bf16.msra.mxu0 %v665
    %1024 = vmatpush.bf16.msra.mxu0 %v663
    %1025 = vmatpush.bf16.msra.mxu0 %v661
    %1026 = vmatpush.bf16.msra.mxu0 %v659
    %1027 = vmatpush.bf16.msra.mxu0 %v657
    %1028 = vmatmul.bf16.gmra.mxu0 %v100
    %v1029 = vpop.f32.mrf.mxu0
    %v1030 = vadd.f32 %v1016, %v1029
    %v1031 = vpop.f32.mrf.mxu0
    %v1032 = vadd.f32 %v1018, %v1031
    %1033 = vdwg.mxu0
    %1034 = vmatpush.bf16.msra.mxu0 %v687
    %1035 = vmatpush.bf16.msra.mxu0 %v685
    %1036 = vmatpush.bf16.msra.mxu0 %v683
    %1037 = vmatpush.bf16.msra.mxu0 %v681
    %1038 = vmatpush.bf16.msra.mxu0 %v679
    %1039 = vmatpush.bf16.msra.mxu0 %v677
    %1040 = vmatpush.bf16.msra.mxu0 %v675
    %1041 = vmatpush.bf16.msra.mxu0 %v673
    %1042 = vmatmul.bf16.gmra.mxu0 %v101
    %v1043 = vpop.f32.mrf.mxu0
    %v1044 = vadd.f32 %v1030, %v1043
    %v1045 = vpop.f32.mrf.mxu0
    %v1046 = vadd.f32 %v1032, %v1045
    %1047 = vdwg.mxu0
    %1048 = vmatpush.bf16.msra.mxu0 %v703
    %1049 = vmatpush.bf16.msra.mxu0 %v701
    %1050 = vmatpush.bf16.msra.mxu0 %v699
    %1051 = vmatpush.bf16.msra.mxu0 %v697
    %1052 = vmatpush.bf16.msra.mxu0 %v695
    %1053 = vmatpush.bf16.msra.mxu0 %v693
    %1054 = vmatpush.bf16.msra.mxu0 %v691
    %1055 = vmatpush.bf16.msra.mxu0 %v689
    %1056 = vmatmul.bf16.gmra.mxu0 %v102
    %v1057 = vpop.f32.mrf.mxu0
    %v1058 = vadd.f32 %v1044, %v1057
    %v1059 = vpop.f32.mrf.mxu0
    %v1060 = vadd.f32 %v1046, %v1059
    %1061 = vdwg.mxu0
    %1062 = vmatpush.bf16.msra.mxu0 %v719
    %1063 = vmatpush.bf16.msra.mxu0 %v717
    %1064 = vmatpush.bf16.msra.mxu0 %v715
    %1065 = vmatpush.bf16.msra.mxu0 %v713
    %1066 = vmatpush.bf16.msra.mxu0 %v711
    %1067 = vmatpush.bf16.msra.mxu0 %v709
    %1068 = vmatpush.bf16.msra.mxu0 %v707
    %1069 = vmatpush.bf16.msra.mxu0 %v705
    %1070 = vmatmul.bf16.gmra.mxu0 %v103
    %v1071 = vpop.f32.mrf.mxu0
    %v1072 = vadd.f32 %v1058, %v1071
    %v1073 = vpop.f32.mrf.mxu0
    %v1074 = vadd.f32 %v1060, %v1073
    %1075 = vdwg.mxu0
    %1076 = vmatpush.bf16.msra.mxu0 %v735
    %1077 = vmatpush.bf16.msra.mxu0 %v733
    %1078 = vmatpush.bf16.msra.mxu0 %v731
    %1079 = vmatpush.bf16.msra.mxu0 %v729
    %1080 = vmatpush.bf16.msra.mxu0 %v727
    %1081 = vmatpush.bf16.msra.mxu0 %v725
    %1082 = vmatpush.bf16.msra.mxu0 %v723
    %1083 = vmatpush.bf16.msra.mxu0 %v721
    %1084 = vmatmul.bf16.gmra.mxu0 %v104
    %v1085 = vpop.f32.mrf.mxu0
    %v1086 = vadd.f32 %v1072, %v1085
    %v1087 = vpop.f32.mrf.mxu0
    %v1088 = vadd.f32 %v1074, %v1087
    %1089 = vdwg.mxu0
    %1090 = vmatpush.bf16.msra.mxu0 %v751
    %1091 = vmatpush.bf16.msra.mxu0 %v749
    %1092 = vmatpush.bf16.msra.mxu0 %v747
    %1093 = vmatpush.bf16.msra.mxu0 %v745
    %1094 = vmatpush.bf16.msra.mxu0 %v743
    %1095 = vmatpush.bf16.msra.mxu0 %v741
    %1096 = vmatpush.bf16.msra.mxu0 %v739
    %1097 = vmatpush.bf16.msra.mxu0 %v737
    %1098 = vmatmul.bf16.gmra.mxu0 %v105
    %v1099 = vpop.f32.mrf.mxu0
    %v1100 = vadd.f32 %v1086, %v1099
    %v1101 = vpop.f32.mrf.mxu0
    %v1102 = vadd.f32 %v1088, %v1101
    %1103 = vdwg.mxu0
    %v1104 = vmax.f32 %v988, 0.0
    %v1105 = vmax.f32 %v1100, 0.0
    %v1106 = vmax.f32 %v990, 0.0
    %v1107 = vmax.f32 %v1102, 0.0
    %v1108 = vpack.c.bf16 %v1106, %v1104
    %v1109 = vpack.c.bf16 %v1107, %v1105
    %v1110 = vld [vmem:[#allocation8] sm:$0xf]
    %v1111 = vld [vmem:[#allocation8 + $0x4] sm:$0xf]
    %v1112 = vld [vmem:[#allocation8 + $0x8] sm:$0xf]
    %v1113 = vld [vmem:[#allocation8 + $0xc] sm:$0xf]
    %v1114 = vld [vmem:[#allocation8 + $0x10] sm:$0xf]
    %v1115 = vld [vmem:[#allocation8 + $0x14] sm:$0xf]
    %v1116 = vld [vmem:[#allocation8 + $0x18] sm:$0xf]
    %v1117 = vld [vmem:[#allocation8 + $0x1c] sm:$0xf]
    %v1118 = vld [vmem:[#allocation8 + $0x20] sm:$0xf]
    %v1119 = vld [vmem:[#allocation8 + $0x24] sm:$0xf]
    %v1120 = vld [vmem:[#allocation8 + $0x28] sm:$0xf]
    %v1121 = vld [vmem:[#allocation8 + $0x2c] sm:$0xf]
    %v1122 = vld [vmem:[#allocation8 + $0x30] sm:$0xf]
    %v1123 = vld [vmem:[#allocation8 + $0x34] sm:$0xf]
    %v1124 = vld [vmem:[#allocation8 + $0x38] sm:$0xf]
    %v1125 = vld [vmem:[#allocation8 + $0x3c] sm:$0xf]
    %v1126 = vld [vmem:[#allocation8 + $0x40] sm:$0xf]
    %v1127 = vld [vmem:[#allocation8 + $0x44] sm:$0xf]
    %v1128 = vld [vmem:[#allocation8 + $0x48] sm:$0xf]
    %v1129 = vld [vmem:[#allocation8 + $0x4c] sm:$0xf]
    %v1130 = vld [vmem:[#allocation8 + $0x50] sm:$0xf]
    %v1131 = vld [vmem:[#allocation8 + $0x54] sm:$0xf]
    %v1132 = vld [vmem:[#allocation8 + $0x58] sm:$0xf]
    %v1133 = vld [vmem:[#allocation8 + $0x5c] sm:$0xf]
    %v1134 = vld [vmem:[#allocation8 + $0x60] sm:$0xf]
    %v1135 = vld [vmem:[#allocation8 + $0x64] sm:$0xf]
    %v1136 = vld [vmem:[#allocation8 + $0x68] sm:$0xf]
    %v1137 = vld [vmem:[#allocation8 + $0x6c] sm:$0xf]
    %v1138 = vld [vmem:[#allocation8 + $0x70] sm:$0xf]
    %v1139 = vld [vmem:[#allocation8 + $0x74] sm:$0xf]
    %v1140 = vld [vmem:[#allocation8 + $0x78] sm:$0xf]
    %v1141 = vld [vmem:[#allocation8 + $0x7c] sm:$0xf]
    %v1142 = vld [vmem:[%s4] sm:$0x1]
    %v1144 = vperm.slane %v1142, 0
    %v1178 = vunpack.c.l.b16 %v1110
    %v1179 = vunpack.c.l.b16 %v1111
    %v1180 = vunpack.c.l.b16 %v1112
    %v1181 = vunpack.c.l.b16 %v1113
    %v1182 = vunpack.c.l.b16 %v1114
    %v1183 = vunpack.c.l.b16 %v1115
    %v1184 = vunpack.c.l.b16 %v1116
    %v1185 = vunpack.c.l.b16 %v1117
    %v1186 = vunpack.c.l.b16 %v1118
    %v1187 = vunpack.c.l.b16 %v1119
    %v1188 = vunpack.c.l.b16 %v1120
    %v1189 = vunpack.c.l.b16 %v1121
    %v1190 = vunpack.c.l.b16 %v1122
    %v1191 = vunpack.c.l.b16 %v1123
    %v1192 = vunpack.c.l.b16 %v1124
    %v1193 = vunpack.c.l.b16 %v1125
    %v1194 = vunpack.c.l.b16 %v1126
    %v1195 = vunpack.c.l.b16 %v1127
    %v1196 = vunpack.c.l.b16 %v1128
    %v1197 = vunpack.c.l.b16 %v1129
    %v1198 = vunpack.c.l.b16 %v1130
    %v1199 = vunpack.c.l.b16 %v1131
    %v1200 = vunpack.c.l.b16 %v1132
    %v1201 = vunpack.c.l.b16 %v1133
    %v1202 = vunpack.c.l.b16 %v1134
    %v1203 = vunpack.c.l.b16 %v1135
    %v1204 = vunpack.c.l.b16 %v1136
    %v1205 = vunpack.c.l.b16 %v1137
    %v1206 = vunpack.c.l.b16 %v1138
    %v1207 = vunpack.c.l.b16 %v1139
    %v1208 = vunpack.c.l.b16 %v1140
    %v1209 = vunpack.c.l.b16 %v1141
    %v1210 = vpack.c.b16 %v1179, %v1178
    %v1211 = vpack.c.b16 %v1181, %v1180
    %v1212 = vpack.c.b16 %v1183, %v1182
    %v1213 = vpack.c.b16 %v1185, %v1184
    %v1214 = vpack.c.b16 %v1187, %v1186
    %v1215 = vpack.c.b16 %v1189, %v1188
    %v1216 = vpack.c.b16 %v1191, %v1190
    %v1217 = vpack.c.b16 %v1193, %v1192
    %v1218 = vpack.c.b16 %v1195, %v1194
    %v1219 = vpack.c.b16 %v1197, %v1196
    %v1220 = vpack.c.b16 %v1199, %v1198
    %v1221 = vpack.c.b16 %v1201, %v1200
    %v1222 = vpack.c.b16 %v1203, %v1202
    %v1223 = vpack.c.b16 %v1205, %v1204
    %v1224 = vpack.c.b16 %v1207, %v1206
    %v1225 = vpack.c.b16 %v1209, %v1208
    %1242 = vmatpush.bf16.msra.mxu0 %v1217
    %1243 = vmatpush.bf16.msra.mxu0 %v1216
    %1244 = vmatpush.bf16.msra.mxu0 %v1215
    %1245 = vmatpush.bf16.msra.mxu0 %v1214
    %1246 = vmatpush.bf16.msra.mxu0 %v1213
    %1247 = vmatpush.bf16.msra.mxu0 %v1212
    %1248 = vmatpush.bf16.msra.mxu0 %v1211
    %1249 = vmatpush.bf16.msra.mxu0 %v1210
    %1250 = vmatmul.bf16.gmra.mxu0 %v1108
    %v1251 = vpop.f32.mrf.mxu0
    %v1252 = vadd.f32 %v1144, %v1251
    %v1253 = vpop.f32.mrf.mxu0
    %v1254 = vadd.f32 %v1144, %v1253
    %1255 = vdwg.mxu0
    %1256 = vmatpush.bf16.msra.mxu0 %v1225
    %1257 = vmatpush.bf16.msra.mxu0 %v1224
    %1258 = vmatpush.bf16.msra.mxu0 %v1223
    %1259 = vmatpush.bf16.msra.mxu0 %v1222
    %1260 = vmatpush.bf16.msra.mxu0 %v1221
    %1261 = vmatpush.bf16.msra.mxu0 %v1220
    %1262 = vmatpush.bf16.msra.mxu0 %v1219
    %1263 = vmatpush.bf16.msra.mxu0 %v1218
    %1264 = vmatmul.bf16.gmra.mxu0 %v1109
    %v1265 = vpop.f32.mrf.mxu0
    %v1266 = vadd.f32 %v1252, %v1265
    %v1267 = vpop.f32.mrf.mxu0
    %v1268 = vadd.f32 %v1254, %v1267
    %1269 = vdwg.mxu0
    %1270 = vadd.xlane.f32.xlu0 %v1266
    %v1271 = vpop.xlane.xlu0 %1270
    %1272 = vadd.xlane.f32.xlu0 %v1268
    %v1273 = vpop.xlane.xlu0 %1272
    %v1274 = vsub.f32 %v1271, %v1266
    %v1275 = vsub.f32 %v1273, %v1268
    %v1276 = vmul.f32 %v1274, 0.125
    %v1277 = vmul.f32 %v1275, 0.125
    %1279 = vset.pattern.permute.xlu0 8
    %1280 = vperm.xlu0 %1279, %v1276
    %v1281 = vpop.permute.xlu0 %1280
    %1284 = vset.pattern.permute.xlu0 8
    %1285 = vperm.xlu0 %1284, %v1277
    %v1286 = vpop.permute.xlu0 %1285
    %v1288 = vsub.f32 %v1266, %v1281
    %v1289 = vsub.f32 %v1268, %v1286
    %1291 = vset.pattern.permute.xlu0 8
    %1292 = vperm.xlu0 %1291, %v1266
    %v1293 = vpop.permute.xlu0 %1292
    %1296 = vset.pattern.permute.xlu0 8
    %1297 = vperm.xlu0 %1296, %v1268
    %v1298 = vpop.permute.xlu0 %1297
    %v1300 = vadd.f32 %v1288, %v1293
    %v1301 = vadd.f32 %v1289, %v1298
    %1302 = vst [vmem:[#allocation10] sm:$0xff] %v1300
    %1303 = vst [vmem:[#allocation10 + $0x8] sm:$0xff] %v1301
    // Predicated region
    $region38: #{tpu_custom_call.1} parent=1 // pred_check
      _
    $region39: #{tpu_custom_call.1} parent=1 // pred_check_branch
      %1305 = sbr.rel (0) target = $region41
    $region40: #{tpu_custom_call.1} parent=1 // pred_region
      %1307 = vsyncadd [#allocation4], 0
      %s1308 = sshll.u32 [#allocation10], 4
      %s1309 = int_to_ptr.vmem [resolvable:$true] %s1308
      %s1310 = sshll.u32 %s5, 4
      %s1311 = int_to_ptr.hbm [resolvable:$true] %s1310
      %1316 = dma.vmem_to_hbm [thread:$0]  %s1309, 256, %s1311, [#allocation4], 128, 128, 8
    $region41: #{tpu_custom_call.1} parent=1 // pred_fallthru
      _
    // Predicated region
    $region42: #{tpu_custom_call.1} parent=1 // pred_check
      _
    $region43: #{tpu_custom_call.1} parent=1 // pred_check_branch
      %1318 = sbr.rel (0) target = $region45
    $region44: #{tpu_custom_call.1} parent=1 // pred_region
      %1320 = dma.done [#allocation4], 256
    $region45: #{tpu_custom_call.1} parent=1 // pred_fallthru
      _
    %1321 = vsyncpa [#allocation3], 1
    %1322 = vsyncpa [#allocation6], 1
    %1323 = vsyncpa [#allocation9], 1
    %1324 = vsyncpa [#allocation4], 1

</llo_original>
